<compile_context>
chip_gen: v7x
topology: tpu7x:2x2x1
jax: 0.10.0
libtpu: 0.0.40
codegen_flags: <defaults>
</compile_context>

<pallas_src>
import functools

import jax
import jax.numpy as jnp
import numpy as np
from jax import lax
from jax.experimental import pallas as pl
from jax.experimental.pallas import tpu as pltpu

GAMMA = 1.1


def _round_up(x, m):
    return -(-x // m) * m


# ---------------------------------------------------------------------------
# Kernel 1: voxel query mask
#   voxel_mask[v] = any_b( |qx[b]-cx[v]| < r[b]  and  |qy[b]-cy[v]| < r[b] )
# ---------------------------------------------------------------------------
def _voxel_mask_kernel(q_ref, cxy_ref, out_ref):
    qx = q_ref[:, 0:1]          # [M, 1]
    qy = q_ref[:, 1:2]          # [M, 1]
    r = q_ref[:, 2:3]           # [M, 1]
    cx = cxy_ref[0:1, :]        # [1, TV]
    cy = cxy_ref[1:2, :]
    dx = jnp.abs(cx - qx)                            # [M, TV]
    dy = jnp.abs(cy - qy)
    inb = jnp.where(jnp.logical_and(dx < r, dy < r), 1.0, 0.0)
    out_ref[...] = jnp.max(inb, axis=0, keepdims=True)   # any over boxes


def voxel_mask_pallas(query_coords, radii, coords, *, tv=512):
    """query_coords [M,2] f32, radii [M] f32, coords [V,2] (voxel grid coords)."""
    M0 = query_coords.shape[0]
    V0 = coords.shape[0]
    M = _round_up(max(M0, 1), 8)
    ntiles = pl.cdiv(max(V0, 1), tv)
    V = ntiles * tv

    q = jnp.concatenate(
        [query_coords.astype(jnp.float32), radii.astype(jnp.float32)[:, None]],
        axis=-1)
    q = jnp.pad(q, ((0, M - M0), (0, 0)))            # padded boxes get r=0 -> excluded

    coords_p = jnp.pad(coords.astype(jnp.float32), ((0, V - V0), (0, 0)))
    cxy = jnp.zeros((8, V), jnp.float32)             # fused cx/cy slab, one DMA stream
    cxy = cxy.at[0, :].set(coords_p[:, 0])
    cxy = cxy.at[1, :].set(coords_p[:, 1])

    out = pl.pallas_call(
        _voxel_mask_kernel,
        out_shape=jax.ShapeDtypeStruct((1, V), jnp.float32),
        grid_spec=pltpu.PrefetchScalarGridSpec(
            num_scalar_prefetch=0,
            grid=(ntiles,),
            in_specs=[
                pl.BlockSpec((M, 3), lambda i: (0, 0)),    # resident boxes
                pl.BlockSpec((8, tv), lambda i: (0, i)),   # fused voxel coords
            ],
            out_specs=pl.BlockSpec((1, tv), lambda i: (0, i)),
        ),
        compiler_params=pltpu.CompilerParams(dimension_semantics=("parallel",)),
    )(q, cxy)
    return out[0, :V0] > 0.0


# ---------------------------------------------------------------------------
# Kernel 2: cylindrical_pool (pool='even')
#   For each box: radius test against all points, select the first `num_sample`
#   in-radius points (== torch.topk on the binary mask, ties by lowest index),
#   gather them via a one-hot MXU matmul in the transposed (lane-dense)
#   orientation, and emit one lane-dense slab:
#     rows 0..C-1 : gathered point features
#     row  C      : gathered validity == sampled mask (0/1)
# ---------------------------------------------------------------------------
def _cyl_pool_kernel(ptsT_ref, tri_ref, boxes_ref, out_ref, *,
                     gamma, num_sample, n_feat):
    TB = boxes_ref.shape[0]
    N = ptsT_ref.shape[1]
    S = num_sample

    px = ptsT_ref[0:1, :]                    # [1, N]
    py = ptsT_ref[1:2, :]
    pvalid = ptsT_ref[n_feat:n_feat + 1, :]  # validity row (0/1)

    bx = boxes_ref[:, 0:1]
    by = boxes_ref[:, 1:2]
    dxl = boxes_ref[:, 3:4]
    dyl = boxes_ref[:, 4:5]
    r = jnp.sqrt((0.5 * dxl) ** 2 + (0.5 * dyl) ** 2) * gamma   # [TB, 1]

    ddx = px - bx                                               # [TB, N]
    ddy = py - by
    dis = jnp.sqrt(ddx * ddx + ddy * ddy)
    mask = jnp.where(jnp.logical_and(dis <= r, pvalid > 0.5), 1.0, 0.0)  # [TB, N]

    # exclusive prefix count of in-radius points via strictly-upper-tri matmul
    # (bf16 operands are exact for 0/1 values; f32 accumulation keeps rank exact)
    rank = jnp.dot(mask.astype(jnp.bfloat16), tri_ref[...],
                   preferred_element_type=jnp.float32)          # [TB, N]

    # one-hot selection: sel[b, s, j] = 1 iff point j is the s-th in-radius point
    slot = lax.broadcasted_iota(jnp.float32, (1, S, N), 1)
    sel = mask[:, None, :] * jnp.where(rank[:, None, :] == slot, 1.0, 0.0)
    sel2d = sel.reshape(TB * S, N)                              # [TB*S, N] f32

    # lane-dense transposed gather: [R_in, N] . [TB*S, N]^T -> [R_in, TB*S]
    # (HIGHEST keeps exact f32 pass-through of point features through the one-hot)
    gathered = lax.dot_general(
        ptsT_ref[...], sel2d,
        dimension_numbers=(((1,), (1,)), ((), ())),
        preferred_element_type=jnp.float32,
        precision=jax.lax.Precision.HIGHEST)
    out_ref[...] = gathered


def cylindrical_pool_pallas(points, boxes, num_sample, gamma=GAMMA, *, tb=64):
    """points [N, C] f32, boxes [B, 9] f32 -> (sampled_points [B,S,C+2], mask [B,S])."""
    N0, C = points.shape
    B0 = boxes.shape[0]
    S = int(num_sample)

    # torch: F.pad(points, [0,0,0,num_sample-len]) when too few points
    if N0 < S:
        points = jnp.pad(points, ((0, S - N0), (0, 0)))
    N1 = points.shape[0]

    if (tb * S) % 128 != 0:
        tb = 128                     # keep the output block lane dim a multiple of 128
    N = _round_up(N1, 128)
    B = _round_up(B0, tb)
    R_in = _round_up(C + 1, 8)

    points_p = jnp.pad(points.astype(jnp.float32), ((0, N - N1), (0, 0)))
    boxes_p = jnp.pad(boxes.astype(jnp.float32), ((0, B - B0), (0, 0)))

    # transposed, lane-dense point slab: rows 0..C-1 = features, row C = validity
    ptsT = jnp.zeros((R_in, N), jnp.float32)
    ptsT = ptsT.at[:C, :].set(points_p.T)
    ptsT = ptsT.at[C, :].set((jnp.arange(N) < N1).astype(jnp.float32))

    # strictly-upper-triangular constant, hoisted out of the kernel (resident input)
    # TODO(synk): for very large N on v7x (64 MiB VMEM) this should become an
    # N-tiled grid axis with a running in-radius count instead of a resident NxN.
    tri = (jnp.arange(N)[:, None] < jnp.arange(N)[None, :]).astype(jnp.bfloat16)

    slab = pl.pallas_call(
        functools.partial(_cyl_pool_kernel, gamma=float(gamma),
                          num_sample=S, n_feat=C),
        out_shape=jax.ShapeDtypeStruct((R_in, B * S), jnp.float32),
        grid_spec=pltpu.PrefetchScalarGridSpec(
            num_scalar_prefetch=0,
            grid=(B // tb,),
            in_specs=[
                pl.BlockSpec((R_in, N), lambda i: (0, 0)),   # resident points slab
                pl.BlockSpec((N, N), lambda i: (0, 0)),      # resident tri constant
                pl.BlockSpec((tb, 9), lambda i: (i, 0)),     # boxes, tiled
            ],
            out_specs=pl.BlockSpec((R_in, tb * S), lambda i: (0, i)),
        ),
        compiler_params=pltpu.CompilerParams(
            dimension_semantics=("parallel",),
            vmem_limit_bytes=64 * 1024 * 1024),
    )(ptsT, tri, boxes_p)

    # layout plumbing + velocity append in XLA (trivial)
    gathered = slab[:C].T.reshape(B, S, C)            # [B, S, C]
    smask = slab[C].reshape(B, S)                     # gathered validity == mask
    vel = boxes_p[:, None, 7:9] * smask[..., None]    # zero where unselected
    sampled = jnp.concatenate([gathered, vel], axis=-1)
    return sampled[:B0], smask[:B0]


# ---------------------------------------------------------------------------
# Pure-JAX references (same semantics, no Pallas) for validation.
# ---------------------------------------------------------------------------
def cylindrical_pool_ref(points, boxes, num_sample, gamma=GAMMA):
    N0 = points.shape[0]
    if N0 < num_sample:
        points = jnp.pad(points, ((0, num_sample - N0), (0, 0)))
    r = jnp.sqrt(jnp.sum((boxes[:, 3:5] * 0.5) ** 2, axis=-1)) * gamma
    d = points[None, :, :2] - boxes[:, None, :2]
    dis = jnp.sqrt(jnp.sum(d * d, axis=-1))
    mask = (dis <= r[:, None]).astype(jnp.float32)
    rank = jnp.cumsum(mask, axis=-1) - mask
    slots = jnp.arange(num_sample, dtype=jnp.float32)
    sel = mask[:, None, :] * (rank[:, None, :] == slots[None, :, None]).astype(jnp.float32)
    smask = sel.sum(-1)
    gathered = jnp.einsum("bsn,nc->bsc", sel, points,
                          precision=jax.lax.Precision.HIGHEST)
    vel = boxes[:, None, 7:9] * smask[..., None]
    return jnp.concatenate([gathered, vel], axis=-1), smask


def voxel_mask_ref(query_coords, radii, coords):
    dist = jnp.abs(query_coords[:, None, :] - coords[None, :, :].astype(jnp.float32))
    return jnp.any(jnp.all(dist < radii[:, None, None], axis=-1), axis=0)


# ---------------------------------------------------------------------------
if __name__ == "__main__":
    key = jax.random.PRNGKey(0)
    k1, k2, k3, k4, k5, k6 = jax.random.split(key, 6)

    # small synthetic shapes consistent with the module's forward
    N, C = 200, 5          # points per (batch, frame) after time masking
    B = 12                 # boxes per frame
    V = 300                # non-empty voxels
    num_sample = 16
    pc_range = [-8.0, -8.0, -3.0, 8.0, 8.0, 1.0]
    voxel_size = 0.5
    pc_start = jnp.asarray(pc_range[:2], jnp.float32)
    grid_xy = int((pc_range[3] - pc_range[0]) / voxel_size)   # 32

    # TODO(synk): spconv PointToVoxel voxelization, dynamic boolean indexing,
    # torch.randperm shuffling, points2box CPU op and iou3d have no static
    # Pallas equivalent; synthetic dense tensors stand in for their outputs.
    points = jnp.concatenate(
        [jax.random.uniform(k1, (N, 2), minval=-8.0, maxval=8.0),
         jax.random.uniform(k2, (N, C - 2), minval=-1.0, maxval=1.0)], axis=-1)

    boxes = jnp.concatenate(
        [jax.random.uniform(k3, (B, 2), minval=-6.0, maxval=6.0),   # x, y
         jnp.full((B, 1), -1.0),                                    # z
         jax.random.uniform(k4, (B, 3), minval=1.0, maxval=4.0),    # dx, dy, dz
         jnp.zeros((B, 1)),                                         # heading
         jax.random.uniform(k5, (B, 2), minval=-2.0, maxval=2.0)],  # vx, vy
        axis=-1).astype(jnp.float32)

    voxel_coords = jax.random.randint(k6, (V, 2), 0, grid_xy).astype(jnp.float32)

    # ---- voxel query mask (forward: query_coords / radiis / voxel_mask) ----
    query_coords = jnp.floor((boxes[:, :2] - pc_start) / voxel_size)
    radii = jnp.ceil(jnp.sqrt(jnp.sum((boxes[:, 3:5] * 0.5) ** 2, -1)) * GAMMA / voxel_size)
    vmask = voxel_mask_pallas(query_coords, radii, voxel_coords)
    vmask_ref = voxel_mask_ref(query_coords, radii, voxel_coords)

    # ---- cylindrical_pool (pool='even') ----
    sampled_points, sampled_mask = cylindrical_pool_pallas(points, boxes, num_sample, GAMMA)
    ref_points, ref_mask = cylindrical_pool_ref(points, boxes, num_sample, GAMMA)

    jax.block_until_ready((vmask, sampled_points, sampled_mask))

    np.testing.assert_array_equal(np.asarray(vmask), np.asarray(vmask_ref))
    np.testing.assert_allclose(np.asarray(sampled_mask), np.asarray(ref_mask),
                               rtol=0, atol=1e-5)
    np.testing.assert_allclose(np.asarray(sampled_points), np.asarray(ref_points),
                               rtol=1e-4, atol=1e-4)
    print("KERNEL_OK")
</pallas_src>

<mosaic_0001>
module attributes {stable_mosaic.version = 11 : i64} {
  func.func @_voxel_mask_kernel(%arg0: i32, %arg1: memref<16x3xf32, #tpu.memory_space<vmem>>, %arg2: memref<8x512xf32, #tpu.memory_space<vmem>>, %arg3: memref<1x512xf32, #tpu.memory_space<vmem>>) attributes {dimension_semantics = [#tpu.dimension_semantics<parallel>], iteration_bounds = array<i64: 1>, scalar_prefetch = 0 : i64, scratch_operands = 0 : i64, tpu.core_type = #tpu.core_type<tc>, window_params = [{pipeline_mode = #tpu.pipeline_mode<synchronous>, transform_indices = @transform_0, window_bounds = array<i64: 16, 3>}, {transform_indices = @transform_1, window_bounds = array<i64: 8, 512>}, {transform_indices = @transform_2, window_bounds = array<i64: 1, 512>}]} {
    %c0 = arith.constant 0 : index
    %c0_0 = arith.constant 0 : index
    %0 = vector.load %arg1[%c0, %c0_0] : memref<16x3xf32, #tpu.memory_space<vmem>>, vector<16x1xf32>
    %c0_1 = arith.constant 0 : index
    %c1 = arith.constant 1 : index
    %1 = vector.load %arg1[%c0_1, %c1] : memref<16x3xf32, #tpu.memory_space<vmem>>, vector<16x1xf32>
    %c0_2 = arith.constant 0 : index
    %c2 = arith.constant 2 : index
    %2 = vector.load %arg1[%c0_2, %c2] : memref<16x3xf32, #tpu.memory_space<vmem>>, vector<16x1xf32>
    %c0_3 = arith.constant 0 : index
    %c0_4 = arith.constant 0 : index
    %3 = vector.load %arg2[%c0_3, %c0_4] : memref<8x512xf32, #tpu.memory_space<vmem>>, vector<1x512xf32>
    %c1_5 = arith.constant 1 : index
    %c0_6 = arith.constant 0 : index
    %4 = vector.load %arg2[%c1_5, %c0_6] : memref<8x512xf32, #tpu.memory_space<vmem>>, vector<1x512xf32>
    %5 = vector.broadcast %3 : vector<1x512xf32> to vector<16x512xf32>
    %6 = vector.broadcast %0 : vector<16x1xf32> to vector<16x512xf32>
    %7 = arith.subf %5, %6 : vector<16x512xf32>
    %8 = math.absf %7 : vector<16x512xf32>
    %9 = vector.broadcast %4 : vector<1x512xf32> to vector<16x512xf32>
    %10 = vector.broadcast %1 : vector<16x1xf32> to vector<16x512xf32>
    %11 = arith.subf %9, %10 : vector<16x512xf32>
    %12 = math.absf %11 : vector<16x512xf32>
    %13 = vector.broadcast %2 : vector<16x1xf32> to vector<16x512xf32>
    %14 = arith.cmpf olt, %8, %13 : vector<16x512xf32>
    %15 = vector.broadcast %2 : vector<16x1xf32> to vector<16x512xf32>
    %16 = arith.cmpf olt, %12, %15 : vector<16x512xf32>
    %17 = arith.andi %14, %16 : vector<16x512xi1>
    %cst = arith.constant 1.000000e+00 : f32
    %cst_7 = arith.constant 0.000000e+00 : f32
    %18 = vector.broadcast %cst : f32 to vector<16x512xf32>
    %19 = vector.broadcast %cst_7 : f32 to vector<16x512xf32>
    %20 = arith.select %17, %18, %19 : vector<16x512xi1>, vector<16x512xf32>
    %cst_8 = arith.constant dense<0xFF800000> : vector<512xf32>
    %21 = vector.multi_reduction <maximumf>, %20, %cst_8 [0] : vector<16x512xf32> to vector<512xf32>
    %22 = vector.shape_cast %21 : vector<512xf32> to vector<1x512xf32>
    %c0_9 = arith.constant 0 : index
    %c0_10 = arith.constant 0 : index
    %23 = vector.load %arg3[%c0_9, %c0_10] : memref<1x512xf32, #tpu.memory_space<vmem>>, vector<1x512xf32>
    tpu.vector_store %arg3[%c0_9, %c0_10], %22 {strides = array<i32>} : memref<1x512xf32, #tpu.memory_space<vmem>>, vector<1x512xf32>,
    return
  }
  func.func @transform_0(%arg0: i32) -> (i32, i32) {
    %c0_i32 = arith.constant 0 : i32
    %c0_i32_0 = arith.constant 0 : i32
    %c0_i32_1 = arith.constant 0 : i32
    return %c0_i32, %c0_i32_0 : i32, i32
  }
  func.func @transform_1(%arg0: i32) -> (i32, i32) {
    %c0_i32 = arith.constant 0 : i32
    %c0_i32_0 = arith.constant 0 : i32
    return %c0_i32, %arg0 : i32, i32
  }
  func.func @transform_2(%arg0: i32) -> (i32, i32) {
    %c0_i32 = arith.constant 0 : i32
    %c0_i32_0 = arith.constant 0 : i32
    return %c0_i32, %arg0 : i32, i32
  }
}

</mosaic_0001>

<llo_original>
// kernel: tpu_custom_call.1
$region0: #{tpu_custom_call.1}
  #allocation0 [shape = 'u32[]', space=smem, size = 0x4, offset = 0x4, fixed_abs, tag = 'smem constant byte address 0x4 - core index']
  #allocation1 [shape = 'u32[144,128]{1,0:T(1,128)}', space=vmem, size = 0x12000, scoped, tag = 'internal scratch']
  %s0 = inlined_call_operand.vmem [shape: f32[16,3], index: 0, kind: input, shape index: {}]
  %s1 = inlined_call_operand.hbm [shape: f32[8,512], index: 1, kind: input, shape index: {}]
  %s2 = inlined_call_operand.hbm [shape: f32[1,512], index: 2, kind: output, shape index: {}]
  %s3 = sld [smem:[#allocation0]]
  $region22: #{tpu_custom_call.1} parent=0
    _
  %s5 = ssub.s32 1, %s3
  %s6 = scalar_select 0, %s5, %s3
  $region1: #{tpu_custom_call.1} parent=0
    #allocation2 [shape = 'u8[16384]{0}', space=vmem, size = 0x4000, scoped, tag = 'input window, operand 1, single buffered']
    #allocation3 [shape = 's32[1]{0}', space=sflag, size = 0x4, scoped, tag = 'scoped memory for tpu_custom_call.1']
    #allocation4 [shape = 's32[1]{0}', space=sflag, size = 0x4, scoped, tag = 'scoped memory for tpu_custom_call.1']
    #allocation5 [shape = 'u8[2048]{0}', space=vmem, size = 0x800, scoped, tag = 'output window, operand 0, single buffered']
    %7 = vsyncpa [#allocation3], 0
    %8 = vsyncpa [#allocation4], 0
    // Predicated region
    $region2: #{tpu_custom_call.1} parent=1 // pred_check
      _
    $region3: #{tpu_custom_call.1} parent=1 // pred_check_branch
      %10 = sbr.rel (0) target = $region5
    $region4: #{tpu_custom_call.1} parent=1 // pred_region
      _
    $region5: #{tpu_custom_call.1} parent=1 // pred_fallthru
      _
    // Predicated region
    $region6: #{tpu_custom_call.1} parent=1 // pred_check
      _
    $region7: #{tpu_custom_call.1} parent=1 // pred_check_branch
      %12 = sbr.rel (0) target = $region9
    $region8: #{tpu_custom_call.1} parent=1 // pred_region
      %s14 = ssub.s32 512, 512
      %15 = vsyncadd [#allocation3], %s14
      %s17 = sshll.u32 [#allocation2], 4
      %s18 = int_to_ptr.vmem [resolvable:$true] %s17
      %20 = dma.hbm_to_vmem [thread:$0]  %s1, 512, %s18, [#allocation3]
    $region9: #{tpu_custom_call.1} parent=1 // pred_fallthru
      _
    // Predicated region
    $region10: #{tpu_custom_call.1} parent=1 // pred_check
      _
    $region11: #{tpu_custom_call.1} parent=1 // pred_check_branch
      %22 = sbr.rel (0) target = $region13
    $region12: #{tpu_custom_call.1} parent=1 // pred_region
      %23 = dma.done [#allocation3], 512
    $region13: #{tpu_custom_call.1} parent=1 // pred_fallthru
      _
    %v24 = vld [vmem:[%s0] sm:$0xff]
    %v25 = vld [vmem:[%s0 + $0x8] sm:$0xff]
    %v26 = vld [vmem:[#allocation2] ss:$8 sm:$0xf]
    %s27 = scalar_lea.vmem [#allocation2], 1
    %v28 = vld [vmem:[%s27] ss:$8 sm:$0xf]
    %v30 = vlaneseq
    %v31 = vshrl.u32 %v30, 7
    %v32 = vsub.s32 0, %v31
    %v33 = vrot.slane %v26, %v32
    %v34 = vlaneseq
    %v35 = vshrl.u32 %v34, 7
    %v36 = vsub.s32 1, %v35
    %v37 = vrot.slane %v26, %v36
    %v38 = vlaneseq
    %v39 = vshrl.u32 %v38, 7
    %v40 = vsub.s32 2, %v39
    %v41 = vrot.slane %v26, %v40
    %v42 = vlaneseq
    %v43 = vshrl.u32 %v42, 7
    %v44 = vsub.s32 3, %v43
    %v45 = vrot.slane %v26, %v44
    %51 = vset.pattern.permute.xlu0 0
    %52 = vperm.xlu0 %51, %v24
    %v53 = vpop.permute.xlu0 %52
    %56 = vset.pattern.permute.xlu0 0
    %57 = vperm.xlu0 %56, %v25
    %v58 = vpop.permute.xlu0 %57
    %v60 = vsub.f32 %v33, %v53
    %v61 = vsub.f32 %v37, %v53
    %v62 = vsub.f32 %v41, %v53
    %v63 = vsub.f32 %v45, %v53
    %v64 = vsub.f32 %v33, %v58
    %v65 = vsub.f32 %v37, %v58
    %v66 = vsub.f32 %v41, %v58
    %v67 = vsub.f32 %v45, %v58
    %v68 = vand.u32 2147483647, %v60
    %v69 = vand.u32 2147483647, %v61
    %v70 = vand.u32 2147483647, %v62
    %v71 = vand.u32 2147483647, %v63
    %v72 = vand.u32 2147483647, %v64
    %v73 = vand.u32 2147483647, %v65
    %v74 = vand.u32 2147483647, %v66
    %v75 = vand.u32 2147483647, %v67
    %v77 = vlaneseq
    %v78 = vshrl.u32 %v77, 7
    %v79 = vsub.s32 0, %v78
    %v80 = vrot.slane %v28, %v79
    %v81 = vlaneseq
    %v82 = vshrl.u32 %v81, 7
    %v83 = vsub.s32 1, %v82
    %v84 = vrot.slane %v28, %v83
    %v85 = vlaneseq
    %v86 = vshrl.u32 %v85, 7
    %v87 = vsub.s32 2, %v86
    %v88 = vrot.slane %v28, %v87
    %v89 = vlaneseq
    %v90 = vshrl.u32 %v89, 7
    %v91 = vsub.s32 3, %v90
    %v92 = vrot.slane %v28, %v91
    %97 = vset.pattern.permute.xlu0 1
    %98 = vperm.xlu0 %97, %v24
    %v99 = vpop.permute.xlu0 %98
    %101 = vset.pattern.permute.xlu0 1
    %102 = vperm.xlu0 %101, %v25
    %v103 = vpop.permute.xlu0 %102
    %v105 = vsub.f32 %v80, %v99
    %v106 = vsub.f32 %v84, %v99
    %v107 = vsub.f32 %v88, %v99
    %v108 = vsub.f32 %v92, %v99
    %v109 = vsub.f32 %v80, %v103
    %v110 = vsub.f32 %v84, %v103
    %v111 = vsub.f32 %v88, %v103
    %v112 = vsub.f32 %v92, %v103
    %v113 = vand.u32 2147483647, %v105
    %v114 = vand.u32 2147483647, %v106
    %v115 = vand.u32 2147483647, %v107
    %v116 = vand.u32 2147483647, %v108
    %v117 = vand.u32 2147483647, %v109
    %v118 = vand.u32 2147483647, %v110
    %v119 = vand.u32 2147483647, %v111
    %v120 = vand.u32 2147483647, %v112
    %121 = vset.pattern.permute.xlu0 2
    %122 = vperm.xlu0 %121, %v24
    %v123 = vpop.permute.xlu0 %122
    %125 = vset.pattern.permute.xlu0 2
    %126 = vperm.xlu0 %125, %v25
    %v127 = vpop.permute.xlu0 %126
    %vm129 = vcmp.lt.f32.partialorder %v68, %v123
    %vm130 = vcmp.lt.f32.partialorder %v69, %v123
    %vm131 = vcmp.lt.f32.partialorder %v70, %v123
    %vm132 = vcmp.lt.f32.partialorder %v71, %v123
    %vm133 = vcmp.lt.f32.partialorder %v72, %v127
    %vm134 = vcmp.lt.f32.partialorder %v73, %v127
    %vm135 = vcmp.lt.f32.partialorder %v74, %v127
    %vm136 = vcmp.lt.f32.partialorder %v75, %v127
    %vm137 = vcmp.lt.f32.partialorder %v113, %v123
    %vm138 = vcmp.lt.f32.partialorder %v114, %v123
    %vm139 = vcmp.lt.f32.partialorder %v115, %v123
    %vm140 = vcmp.lt.f32.partialorder %v116, %v123
    %vm141 = vcmp.lt.f32.partialorder %v117, %v127
    %vm142 = vcmp.lt.f32.partialorder %v118, %v127
    %vm143 = vcmp.lt.f32.partialorder %v119, %v127
    %vm144 = vcmp.lt.f32.partialorder %v120, %v127
    %vm145 = vmand %vm129, %vm137
    %vm146 = vmand %vm130, %vm138
    %vm147 = vmand %vm131, %vm139
    %vm148 = vmand %vm132, %vm140
    %vm149 = vmand %vm133, %vm141
    %vm150 = vmand %vm134, %vm142
    %vm151 = vmand %vm135, %vm143
    %vm152 = vmand %vm136, %vm144
    %v153 = vsel %vm145, 1.0, 0.0
    %v154 = vsel %vm146, 1.0, 0.0
    %v155 = vsel %vm147, 1.0, 0.0
    %v156 = vsel %vm148, 1.0, 0.0
    %v157 = vsel %vm149, 1.0, 0.0
    %v158 = vsel %vm150, 1.0, 0.0
    %v159 = vsel %vm151, 1.0, 0.0
    %v160 = vsel %vm152, 1.0, 0.0
    %v161 = vmax.f32 %v153, %v157
    %v162 = vrot.slane %v161, 4
    %v163 = vmax.f32 %v161, %v162
    %v164 = vrot.slane %v163, 2
    %v165 = vmax.f32 %v163, %v164
    %v166 = vrot.slane %v165, 1
    %v167 = vmax.f32 %v165, %v166
    %v168 = vmax.f32 %v154, %v158
    %v169 = vrot.slane %v168, 4
    %v170 = vmax.f32 %v168, %v169
    %v171 = vrot.slane %v170, 2
    %v172 = vmax.f32 %v170, %v171
    %v173 = vrot.slane %v172, 1
    %v174 = vmax.f32 %v172, %v173
    %v175 = vmax.f32 %v155, %v159
    %v176 = vrot.slane %v175, 4
    %v177 = vmax.f32 %v175, %v176
    %v178 = vrot.slane %v177, 2
    %v179 = vmax.f32 %v177, %v178
    %v180 = vrot.slane %v179, 1
    %v181 = vmax.f32 %v179, %v180
    %v182 = vmax.f32 %v156, %v160
    %v183 = vrot.slane %v182, 4
    %v184 = vmax.f32 %v182, %v183
    %v185 = vrot.slane %v184, 2
    %v186 = vmax.f32 %v184, %v185
    %v187 = vrot.slane %v186, 1
    %v188 = vmax.f32 %v186, %v187
    %v193 = vcombine.low %v167, %v174
    %v194 = vcombine.low %v181, %v188
    %v196 = vunpack.c.l.s4 1966171168
    %v197 = vunpack.c.0.s8 %v196
    %v198 = vlaneseq
    %v199 = vshrl.u32 %v198, 7
    %v200 = vsub.s32 %v197, %v199
    %v201 = vrot.slane %v193, %v200
    %v203 = vunpack.c.l.s4 1966171168
    %v204 = vunpack.c.0.s8 %v203
    %v205 = vlaneseq
    %v206 = vshrl.u32 %v205, 7
    %v207 = vsub.s32 %v204, %v206
    %v208 = vrot.slane %v194, %v207
    %v209 = vcombine.low %v201, %v208
    %v211 = vunpack.c.l.s4 1966171168
    %v212 = vunpack.c.0.s8 %v211
    %v213 = vlaneseq
    %v214 = vshrl.u32 %v213, 7
    %v215 = vsub.s32 %v212, %v214
    %v216 = vrot.slane %v209, %v215
    %v218 = vlaneseq
    %vm219 = vcmp.ge.s32.totalorder %v218, 0
    %vm220 = vcmp.lt.s32.totalorder %v218, 512
    %vm221 = vmand %vm219, %vm220
    %222 = vst.msk [vmem:[#allocation5] sm:$0xf] %vm221, %v216
    // Predicated region
    $region14: #{tpu_custom_call.1} parent=1 // pred_check
      _
    $region15: #{tpu_custom_call.1} parent=1 // pred_check_branch
      %224 = sbr.rel (0) target = $region17
    $region16: #{tpu_custom_call.1} parent=1 // pred_region
      %s226 = ssub.s32 64, 64
      %227 = vsyncadd [#allocation4], %s226
      %s229 = sshll.u32 [#allocation5], 4
      %s230 = int_to_ptr.vmem [resolvable:$true] %s229
      %232 = dma.vmem_to_hbm [thread:$0]  %s230, 64, %s2, [#allocation4]
    $region17: #{tpu_custom_call.1} parent=1 // pred_fallthru
      _
    // Predicated region
    $region18: #{tpu_custom_call.1} parent=1 // pred_check
      _
    $region19: #{tpu_custom_call.1} parent=1 // pred_check_branch
      %234 = sbr.rel (0) target = $region21
    $region20: #{tpu_custom_call.1} parent=1 // pred_region
      %235 = dma.done [#allocation4], 64
    $region21: #{tpu_custom_call.1} parent=1 // pred_fallthru
      _
    %236 = vsyncpa [#allocation3], 1
    %237 = vsyncpa [#allocation4], 1

</llo_original>
